<compile_context>
chip_gen: v7x
topology: tpu7x:2x2x1
jax: 0.10.0
libtpu: 0.0.40
codegen_flags: <defaults>
</compile_context>

<pallas_src>
import jax
import jax.numpy as jnp
from jax.experimental import pallas as pl
from jax.experimental.pallas import tpu as pltpu

EPS = 1e-12
BN_EPS = 1e-3  # _get_norm_layer(..., eps=0.001)


# ----------------------------------------------------------------------------
# Fused kernel: im2col-matmul conv3x3(pad=1) for all 5 heads -> +shift (BN) ->
# ReLU -> block-diagonal 1x1 conv -> head-specific postprocess.
# ----------------------------------------------------------------------------
def _make_fused_head_kernel(num_classes, dep0_idx):
    def kernel(rhs_ref, w3_ref, shift_ref, w1_ref, b1_ref, out_ref):
        # rhs_ref   : (K=9*Cin, TN)  bf16 im2col patches (lanes = spatial)
        # w3_ref    : (Cfull, K)     bf16 fused 3x3 weights, BN scale folded in
        # shift_ref : (Cfull, 1)     f32  fused BN shift (conv bias folded in)
        # w1_ref    : (Cout, Cfull)  bf16 block-diagonal fused 1x1 weights
        # b1_ref    : (Cout, 1)      f32
        # out_ref   : (Cout, TN)     f32  channel-major, lane-dense
        acc = jnp.dot(w3_ref[...], rhs_ref[...],
                      preferred_element_type=jnp.float32)        # (Cfull, TN)
        feat = jnp.maximum(acc + shift_ref[...], 0.0)            # BN shift + ReLU
        out = jnp.dot(w1_ref[...], feat.astype(jnp.bfloat16),
                      preferred_element_type=jnp.float32) + b1_ref[...]
        out_ref[...] = out
        # heatmap rows [0, num_classes): sigmoid + clamp (only these rows hit EUP)
        heat = out[0:num_classes, :]
        out_ref[0:num_classes, :] = jnp.clip(jax.nn.sigmoid(heat),
                                             1e-4, 1.0 - 1e-4)
        # depth channel 0: 1/(sigmoid + EPS) - 1   (single row)
        d0 = out[dep0_idx:dep0_idx + 1, :]
        out_ref[dep0_idx:dep0_idx + 1, :] = 1.0 / (jax.nn.sigmoid(d0) + EPS) - 1.0

    return kernel


def _fused_forward(rhs, packed, num_classes, dep0_idx):
    # rhs: (B, K, HW) bf16 im2col patches
    B, K, HW = rhs.shape
    Cfull = packed["w3t"].shape[0]
    Cout = packed["w1t"].shape[0]

    if B > 1:
        # one parallel grid step per image (v7x: both TCs; v5e/v6e: short loop)
        grid_n, tn = B, HW
        idx = lambda i: (i, 0, 0)
    else:
        # B == 1: split the lane (HW) axis 2-way so v7x still uses both cores
        grid_n = 2 if HW % 256 == 0 else 1
        tn = HW // grid_n
        idx = lambda i: (0, 0, i)

    kernel = _make_fused_head_kernel(num_classes, dep0_idx)
    out = pl.pallas_call(
        kernel,
        out_shape=jax.ShapeDtypeStruct((B, Cout, HW), jnp.float32),
        grid=(grid_n,),
        in_specs=[
            pl.BlockSpec((pl.Squeezed(), K, tn), idx),
            pl.BlockSpec((Cfull, K), lambda i: (0, 0)),
            pl.BlockSpec((Cfull, 1), lambda i: (0, 0)),
            pl.BlockSpec((Cout, Cfull), lambda i: (0, 0)),
            pl.BlockSpec((Cout, 1), lambda i: (0, 0)),
        ],
        out_specs=pl.BlockSpec((pl.Squeezed(), Cout, tn), idx),
        compiler_params=pltpu.CompilerParams(
            dimension_semantics=("parallel",)),
    )(rhs, packed["w3t"], packed["shift"], packed["w1t"], packed["b1"])
    return out


# ----------------------------------------------------------------------------
# Deterministic synthetic parameters (no checkpoint loading)
# ----------------------------------------------------------------------------
def _init_head_raw(key, Cin, Cf, Cout, final_bias=None):
    ks = jax.random.split(key, 8)
    w3 = 0.05 * jax.random.normal(ks[0], (3, 3, Cin, Cf), jnp.float32)  # HWIO
    b3 = 0.05 * jax.random.normal(ks[1], (Cf,), jnp.float32)
    gamma = 1.0 + 0.1 * jax.random.normal(ks[2], (Cf,), jnp.float32)
    beta = 0.1 * jax.random.normal(ks[3], (Cf,), jnp.float32)
    mean = 0.1 * jax.random.normal(ks[4], (Cf,), jnp.float32)
    var = 1.0 + 0.1 * jax.random.uniform(ks[5], (Cf,), jnp.float32)
    w1 = 0.05 * jax.random.normal(ks[6], (Cf, Cout), jnp.float32)
    b1 = 0.05 * jax.random.normal(ks[7], (Cout,), jnp.float32)
    if final_bias is not None:                 # heatmap bias_init_with_prob
        b1 = jnp.full((Cout,), final_bias, jnp.float32)
    return dict(w3=w3, b3=b3, gamma=gamma, beta=beta, mean=mean, var=var,
                w1=w1, b1=b1)


def _pack_fused_params(raw_heads):
    """Concatenate per-head params into one fused-kernel parameter set."""
    w3_blocks, shift_blocks, b1_blocks = [], [], []
    cf_list, cout_list = [], []
    for p in raw_heads:
        Cf = p["gamma"].shape[0]
        Cin = p["w3"].shape[2]
        cf_list.append(Cf)
        cout_list.append(p["w1"].shape[1])
        scale = p["gamma"] / jnp.sqrt(p["var"] + BN_EPS)         # eval-mode BN
        # (3,3,Cin,Cf) HWIO -> (Cf, 3,3,Cin) -> (Cf, 9*Cin), tap-major rows,
        # with the BN scale folded into the weights (exact: per-out-channel).
        w3t = jnp.transpose(p["w3"], (3, 0, 1, 2)).reshape(Cf, 9 * Cin)
        w3_blocks.append(w3t * scale[:, None])
        shift_blocks.append(p["beta"] + (p["b3"] - p["mean"]) * scale)
        b1_blocks.append(p["b1"])
    Cfull = sum(cf_list)
    Cout = sum(cout_list)
    w3t = jnp.concatenate(w3_blocks, axis=0)                     # (Cfull, 9*Cin)
    shift = jnp.concatenate(shift_blocks).reshape(Cfull, 1)
    # Block-diagonal 1x1 conv: each head's outputs only see its own features.
    w1t = jnp.zeros((Cout, Cfull), jnp.float32)
    r0, c0 = 0, 0
    for p, Cf, co in zip(raw_heads, cf_list, cout_list):
        w1t = w1t.at[r0:r0 + co, c0:c0 + Cf].set(p["w1"].T)
        r0 += co
        c0 += Cf
    b1 = jnp.concatenate(b1_blocks).reshape(Cout, 1)
    return dict(w3t=w3t.astype(jnp.bfloat16), shift=shift,
                w1t=w1t.astype(jnp.bfloat16), b1=b1)


# ----------------------------------------------------------------------------
# Module wrapper mirroring SmokeResizeHead.forward / forward_single
# ----------------------------------------------------------------------------
class SmokeResizeHeadPallas:
    def __init__(self, in_channel, feat_channel, num_classes,
                 num_alpha_bins=12, *, key):
        self.num_classes = num_classes
        self.num_alpha_bins = num_alpha_bins
        ks = jax.random.split(key, 5)
        heatmap_bias = -jnp.log((1.0 - 0.1) / 0.1)   # bias_init_with_prob(0.1)
        self.raw_heat = _init_head_raw(ks[0], in_channel, feat_channel,
                                       num_classes, final_bias=heatmap_bias)
        self.raw_off = _init_head_raw(ks[1], in_channel, feat_channel, 2)
        self.raw_dim = _init_head_raw(ks[2], in_channel, feat_channel, 3)
        self.raw_dep = _init_head_raw(ks[3], in_channel, feat_channel, 2)
        # dir_cls / dir_reg 1x1 convs stacked along output channels (share dir_feat)
        self.raw_dir = _init_head_raw(ks[4], in_channel, feat_channel,
                                      2 * num_alpha_bins)
        order = [self.raw_heat, self.raw_off, self.raw_dim, self.raw_dep,
                 self.raw_dir]
        self.packed = _pack_fused_params(order)
        nc = num_classes
        self.sl_heat = (0, nc)
        self.sl_off = (nc, nc + 2)
        self.sl_dim = (nc + 2, nc + 5)
        self.sl_dep = (nc + 5, nc + 7)
        self.sl_cls = (nc + 7, nc + 7 + num_alpha_bins)
        self.sl_reg = (nc + 7 + num_alpha_bins, nc + 7 + 2 * num_alpha_bins)
        self.dep0_idx = nc + 5
        self.cout_total = nc + 7 + 2 * num_alpha_bins

    # --- Pallas forward -----------------------------------------------------
    def forward_single(self, feat_nchw):
        B, Cin, H, W = feat_nchw.shape
        # input prep (single pass, fused under jit): zero-pad + im2col patch
        # matrix in channel-major layout, H*W on the fast (lane) axis.
        x = feat_nchw.astype(jnp.float32)
        xpad = jnp.pad(x, ((0, 0), (0, 0), (1, 1), (1, 1)))      # (B,Cin,H+2,W+2)
        taps = [xpad[:, :, dy:dy + H, dx:dx + W]
                for dy in range(3) for dx in range(3)]           # 9 x (B,Cin,H,W)
        rhs = jnp.stack(taps, axis=1).reshape(B, 9 * Cin, H * W)
        rhs = rhs.astype(jnp.bfloat16)                           # MXU-native operand
        packed_out = _fused_forward(rhs, self.packed,
                                    self.num_classes, self.dep0_idx)
        out = packed_out.reshape(B, self.cout_total, H, W)       # already NCHW-major
        sl = lambda lo, hi: out[:, lo:hi]
        heat = sl(*self.sl_heat)
        off = sl(*self.sl_off)
        dim = sl(*self.sl_dim)
        dep = sl(*self.sl_dep)
        alpha_cls = sl(*self.sl_cls)
        alpha_off = sl(*self.sl_reg)
        return heat, off, dim, alpha_cls, alpha_off, dep

    def forward(self, feats):
        # multi_apply: tuple of per-output lists across levels
        outs = [self.forward_single(f) for f in feats]
        return tuple(list(o) for o in zip(*outs))

    # --- pure-JAX f32 reference for validation -------------------------------
    def _head_ref(self, x_nhwc, p, mode):
        y = jax.lax.conv_general_dilated(
            x_nhwc, p["w3"], window_strides=(1, 1), padding="SAME",
            dimension_numbers=("NHWC", "HWIO", "NHWC")) + p["b3"]
        y = (y - p["mean"]) / jnp.sqrt(p["var"] + BN_EPS) * p["gamma"] + p["beta"]
        y = jnp.maximum(y, 0.0)
        out = jnp.einsum("bhwc,co->bhwo", y, p["w1"]) + p["b1"]
        if mode == "heatmap":
            out = jnp.clip(jax.nn.sigmoid(out), 1e-4, 1.0 - 1e-4)
        elif mode == "depth":
            d0 = 1.0 / (jax.nn.sigmoid(out[..., 0:1]) + EPS) - 1.0
            out = jnp.concatenate([d0, out[..., 1:]], axis=-1)
        return out

    def _forward_single_ref(self, feat_nchw):
        x = jnp.transpose(feat_nchw.astype(jnp.float32), (0, 2, 3, 1))
        heat = self._head_ref(x, self.raw_heat, "heatmap")
        off = self._head_ref(x, self.raw_off, "none")
        dim = self._head_ref(x, self.raw_dim, "none")
        dep = self._head_ref(x, self.raw_dep, "depth")
        dirs = self._head_ref(x, self.raw_dir, "none")
        alpha_cls = dirs[..., :self.num_alpha_bins]
        alpha_off = dirs[..., self.num_alpha_bins:]
        to_nchw = lambda a: jnp.transpose(a, (0, 3, 1, 2))
        return (to_nchw(heat), to_nchw(off), to_nchw(dim),
                to_nchw(alpha_cls), to_nchw(alpha_off), to_nchw(dep))


if __name__ == "__main__":
    key = jax.random.PRNGKey(0)
    k_param, k_in = jax.random.split(key)

    B, in_channel, H, W = 2, 32, 16, 16
    feat_channel, num_classes, num_alpha_bins = 32, 3, 12

    head = SmokeResizeHeadPallas(in_channel, feat_channel, num_classes,
                                 num_alpha_bins, key=k_param)
    feat = jax.random.normal(k_in, (B, in_channel, H, W), jnp.float32)  # NCHW

    fwd = jax.jit(head.forward_single)
    outs = fwd(feat)
    outs = jax.block_until_ready(outs)

    # sanity check against pure-JAX f32 reference (kernel uses bf16 MXU operands
    # with f32 accumulation, hence the slightly relaxed tolerance)
    ref = head._forward_single_ref(feat)
    names = ["center_heatmap_pred", "offset_pred", "dim_pred",
             "alpha_cls_pred", "alpha_offset_pred", "depth_pred"]
    expected_channels = [num_classes, 2, 3, num_alpha_bins, num_alpha_bins, 2]
    for i, (name, c) in enumerate(zip(names, expected_channels)):
        got = outs[i]
        assert got.shape == (B, c, H, W), (name, got.shape)
        assert got.dtype == jnp.float32
        assert jnp.allclose(got, ref[i], atol=2e-2, rtol=2e-2), name

    # multi-level API (multi_apply equivalent) also works
    multi = head.forward([feat])
    jax.block_until_ready(multi)
    assert len(multi) == 6 and len(multi[0]) == 1

    print("KERNEL_OK")
</pallas_src>

<mosaic_0001>
module attributes {stable_mosaic.version = 11 : i64} {
  func.func @kernel(%arg0: i32, %arg1: memref<1x288x256xbf16, #tpu.memory_space<vmem>>, %arg2: memref<160x288xbf16, #tpu.memory_space<vmem>>, %arg3: memref<160x1xf32, #tpu.memory_space<vmem>>, %arg4: memref<34x160xbf16, #tpu.memory_space<vmem>>, %arg5: memref<34x1xf32, #tpu.memory_space<vmem>>, %arg6: memref<1x34x256xf32, #tpu.memory_space<vmem>>) attributes {dimension_semantics = [#tpu.dimension_semantics<parallel>], iteration_bounds = array<i64: 2>, scalar_prefetch = 0 : i64, scratch_operands = 0 : i64, tpu.core_type = #tpu.core_type<tc>, window_params = [{transform_indices = @transform_0, window_bounds = array<i64: 1, 288, 256>}, {pipeline_mode = #tpu.pipeline_mode<synchronous>, transform_indices = @transform_1, window_bounds = array<i64: 160, 288>}, {pipeline_mode = #tpu.pipeline_mode<synchronous>, transform_indices = @transform_2, window_bounds = array<i64: 160, 1>}, {pipeline_mode = #tpu.pipeline_mode<synchronous>, transform_indices = @transform_3, window_bounds = array<i64: 34, 160>}, {pipeline_mode = #tpu.pipeline_mode<synchronous>, transform_indices = @transform_4, window_bounds = array<i64: 34, 1>}, {transform_indices = @transform_5, window_bounds = array<i64: 1, 34, 256>}]} {
    %c0 = arith.constant 0 : index
    %c0_0 = arith.constant 0 : index
    %0 = vector.load %arg2[%c0, %c0_0] : memref<160x288xbf16, #tpu.memory_space<vmem>>, vector<160x288xbf16>
    %c0_1 = arith.constant 0 : index
    %c0_2 = arith.constant 0 : index
    %c0_3 = arith.constant 0 : index
    %1 = vector.load %arg1[%c0_1, %c0_2, %c0_3] : memref<1x288x256xbf16, #tpu.memory_space<vmem>>, vector<1x288x256xbf16>
    %2 = vector.shape_cast %1 : vector<1x288x256xbf16> to vector<288x256xbf16>
    %cst = arith.constant dense<0.000000e+00> : vector<160x256xf32>
    %3 = tpu.matmul %0, %2, %cst {dimension_numbers = #tpu.dot_dimension_numbers<[1], [0], [0], [1], [0, 0, 1, 1], [], []>} : vector<160x288xbf16>, vector<288x256xbf16>, vector<160x256xf32> -> vector<160x256xf32>
    %c0_4 = arith.constant 0 : index
    %c0_5 = arith.constant 0 : index
    %4 = vector.load %arg3[%c0_4, %c0_5] : memref<160x1xf32, #tpu.memory_space<vmem>>, vector<160x1xf32>
    %5 = vector.broadcast %4 : vector<160x1xf32> to vector<160x256xf32>
    %6 = arith.addf %3, %5 : vector<160x256xf32>
    %cst_6 = arith.constant 0.000000e+00 : f32
    %7 = vector.broadcast %cst_6 : f32 to vector<160x256xf32>
    %8 = arith.maximumf %6, %7 : vector<160x256xf32>
    %c0_7 = arith.constant 0 : index
    %c0_8 = arith.constant 0 : index
    %9 = vector.load %arg4[%c0_7, %c0_8] : memref<34x160xbf16, #tpu.memory_space<vmem>>, vector<34x160xbf16>
    %10 = arith.truncf %8 : vector<160x256xf32> to vector<160x256xbf16>
    %cst_9 = arith.constant dense<0.000000e+00> : vector<34x256xf32>
    %11 = tpu.matmul %9, %10, %cst_9 {dimension_numbers = #tpu.dot_dimension_numbers<[1], [0], [0], [1], [0, 0, 1, 1], [], []>} : vector<34x160xbf16>, vector<160x256xbf16>, vector<34x256xf32> -> vector<34x256xf32>
    %c0_10 = arith.constant 0 : index
    %c0_11 = arith.constant 0 : index
    %12 = vector.load %arg5[%c0_10, %c0_11] : memref<34x1xf32, #tpu.memory_space<vmem>>, vector<34x1xf32>
    %13 = vector.broadcast %12 : vector<34x1xf32> to vector<34x256xf32>
    %14 = arith.addf %11, %13 : vector<34x256xf32>
    %c0_12 = arith.constant 0 : index
    %c0_13 = arith.constant 0 : index
    %c0_14 = arith.constant 0 : index
    %15 = vector.load %arg6[%c0_12, %c0_13, %c0_14] : memref<1x34x256xf32, #tpu.memory_space<vmem>>, vector<1x34x256xf32>
    %16 = vector.shape_cast %15 : vector<1x34x256xf32> to vector<34x256xf32>
    %17 = vector.shape_cast %14 : vector<34x256xf32> to vector<1x34x256xf32>
    tpu.vector_store %arg6[%c0_12, %c0_13, %c0_14], %17 {strides = array<i32>} : memref<1x34x256xf32, #tpu.memory_space<vmem>>, vector<1x34x256xf32>,
    %18 = vector.extract_strided_slice %14 {offsets = [0, 0], sizes = [3, 256], strides = [1, 1]} : vector<34x256xf32> to vector<3x256xf32>
    %19 = arith.negf %18 : vector<3x256xf32>
    %20 = math.exp %19 : vector<3x256xf32>
    %cst_15 = arith.constant 1.000000e+00 : f32
    %21 = vector.broadcast %cst_15 : f32 to vector<3x256xf32>
    %22 = arith.addf %21, %20 : vector<3x256xf32>
    %23 = arith.divf %21, %22 : vector<3x256xf32>
    %cst_16 = arith.constant 9.99999974E-5 : f32
    %cst_17 = arith.constant 0.999899983 : f32
    %24 = vector.broadcast %cst_16 : f32 to vector<3x256xf32>
    %25 = arith.maximumf %24, %23 : vector<3x256xf32>
    %26 = vector.broadcast %cst_17 : f32 to vector<3x256xf32>
    %27 = arith.minimumf %26, %25 : vector<3x256xf32>
    %c0_18 = arith.constant 0 : index
    %c0_19 = arith.constant 0 : index
    %c0_20 = arith.constant 0 : index
    %28 = vector.load %arg6[%c0_18, %c0_19, %c0_20] : memref<1x34x256xf32, #tpu.memory_space<vmem>>, vector<1x3x256xf32>
    %29 = vector.shape_cast %28 : vector<1x3x256xf32> to vector<3x256xf32>
    %30 = vector.shape_cast %27 : vector<3x256xf32> to vector<1x3x256xf32>
    tpu.vector_store %arg6[%c0_18, %c0_19, %c0_20], %30 {strides = array<i32>} : memref<1x34x256xf32, #tpu.memory_space<vmem>>, vector<1x3x256xf32>,
    %31 = vector.extract_strided_slice %14 {offsets = [8, 0], sizes = [1, 256], strides = [1, 1]} : vector<34x256xf32> to vector<1x256xf32>
    %32 = arith.negf %31 : vector<1x256xf32>
    %33 = math.exp %32 : vector<1x256xf32>
    %cst_21 = arith.constant 1.000000e+00 : f32
    %34 = vector.broadcast %cst_21 : f32 to vector<1x256xf32>
    %35 = arith.addf %34, %33 : vector<1x256xf32>
    %36 = arith.divf %34, %35 : vector<1x256xf32>
    %cst_22 = arith.constant 9.99999996E-13 : f32
    %37 = vector.broadcast %cst_22 : f32 to vector<1x256xf32>
    %38 = arith.addf %36, %37 : vector<1x256xf32>
    %cst_23 = arith.constant 1.000000e+00 : f32
    %39 = vector.broadcast %cst_23 : f32 to vector<1x256xf32>
    %40 = arith.divf %39, %38 : vector<1x256xf32>
    %cst_24 = arith.constant 1.000000e+00 : f32
    %41 = vector.broadcast %cst_24 : f32 to vector<1x256xf32>
    %42 = arith.subf %40, %41 : vector<1x256xf32>
    %c0_25 = arith.constant 0 : index
    %c8 = arith.constant 8 : index
    %c0_26 = arith.constant 0 : index
    %43 = vector.load %arg6[%c0_25, %c8, %c0_26] : memref<1x34x256xf32, #tpu.memory_space<vmem>>, vector<1x1x256xf32>
    %44 = vector.shape_cast %43 : vector<1x1x256xf32> to vector<1x256xf32>
    %45 = vector.shape_cast %42 : vector<1x256xf32> to vector<1x1x256xf32>
    tpu.vector_store %arg6[%c0_25, %c8, %c0_26], %45 {strides = array<i32>} : memref<1x34x256xf32, #tpu.memory_space<vmem>>, vector<1x1x256xf32>,
    return
  }
  func.func @transform_0(%arg0: i32) -> (i32, i32, i32) {
    %c0_i32 = arith.constant 0 : i32
    %c0_i32_0 = arith.constant 0 : i32
    %c0_i32_1 = arith.constant 0 : i32
    return %arg0, %c0_i32, %c0_i32_0 : i32, i32, i32
  }
  func.func @transform_1(%arg0: i32) -> (i32, i32) {
    %c0_i32 = arith.constant 0 : i32
    %c0_i32_0 = arith.constant 0 : i32
    %c0_i32_1 = arith.constant 0 : i32
    return %c0_i32, %c0_i32_0 : i32, i32
  }
  func.func @transform_2(%arg0: i32) -> (i32, i32) {
    %c0_i32 = arith.constant 0 : i32
    %c0_i32_0 = arith.constant 0 : i32
    %c0_i32_1 = arith.constant 0 : i32
    return %c0_i32, %c0_i32_0 : i32, i32
  }
  func.func @transform_3(%arg0: i32) -> (i32, i32) {
    %c0_i32 = arith.constant 0 : i32
    %c0_i32_0 = arith.constant 0 : i32
    %c0_i32_1 = arith.constant 0 : i32
    return %c0_i32, %c0_i32_0 : i32, i32
  }
  func.func @transform_4(%arg0: i32) -> (i32, i32) {
    %c0_i32 = arith.constant 0 : i32
    %c0_i32_0 = arith.constant 0 : i32
    %c0_i32_1 = arith.constant 0 : i32
    return %c0_i32, %c0_i32_0 : i32, i32
  }
  func.func @transform_5(%arg0: i32) -> (i32, i32, i32) {
    %c0_i32 = arith.constant 0 : i32
    %c0_i32_0 = arith.constant 0 : i32
    %c0_i32_1 = arith.constant 0 : i32
    return %arg0, %c0_i32, %c0_i32_0 : i32, i32, i32
  }
}

</mosaic_0001>

<llo_original>
// kernel: forward_single.1
$region0: #{forward_single.1}
  #allocation0 [shape = 'u32[]', space=smem, size = 0x4, offset = 0x4, fixed_abs, tag = 'smem constant byte address 0x4 - core index']
  #allocation1 [shape = 'u32[144,128]{1,0:T(1,128)}', space=vmem, size = 0x12000, scoped, tag = 'internal scratch']
  %s0 = inlined_call_operand.vmem [shape: bf16[2,288,256], index: 0, kind: input, shape index: {}]
  %s1 = inlined_call_operand.vmem [shape: bf16[160,288], index: 1, kind: input, shape index: {}]
  %s2 = inlined_call_operand.vmem [shape: f32[160,1], index: 2, kind: input, shape index: {}]
  %s3 = inlined_call_operand.vmem [shape: bf16[34,160], index: 3, kind: input, shape index: {}]
  %s4 = inlined_call_operand.vmem [shape: f32[34,1], index: 4, kind: input, shape index: {}]
  %s5 = inlined_call_operand.vmem [shape: f32[2,34,256], index: 5, kind: output, shape index: {}]
  %s6 = sld [smem:[#allocation0]]
  $region53: #{forward_single.1} parent=0
    _
  %s8 = ssub.s32 1, %s6
  %s9 = scalar_select 0, %s8, %s6
  loop: start=0, step=1, limit=4
  $region2: #{forward_single.1} parent=0 // loop_pre_header
    _
  $region3: #{forward_single.1} parent=0 // loop_header
    %s11 = sphi 0, %s15
    %p12 = scmp.ge.s32.totalorder %s11, 4
    %s21 = sphi 0, %s23
    %s24 = sphi 0, %s21
    %s25 = sphi 0, %s24
    %s41 = sphi 0, %s25
    %s45 = sphi 0, %s45
    %s47 = sphi 0, %s45
    %s48 = sphi 0, %s47
    %s62 = sphi 0, %s48
    %s66 = sphi 0, %s66
    %s68 = sphi 0, %s66
    %s69 = sphi 0, %s68
    %s83 = sphi 0, %s69
    %s87 = sphi 0, %s87
    %s89 = sphi 0, %s87
    %s90 = sphi 0, %s89
    %s104 = sphi 0, %s90
    %s108 = sphi 0, %s108
    %s110 = sphi 0, %s108
    %s111 = sphi 0, %s110
    %s125 = sphi 0, %s111
    %s131 = sphi 0, %s133
    %s134 = sphi 0, %s131
    %s135 = sphi 0, %s134
    %s151 = sphi 0, %s135
  $region4: #{forward_single.1} parent=0 // loop_header_branch
    %14 = sbr.rel (%p12) target = $region8
  $region5: #{forward_single.1} parent=0 // loop_body
    %s16 = ssub.s32 %s11, 1
    %s17 = ssub.s32 %s11, 2
    %s18 = sadd.s32 %s11, 1
    %s19 = ssub.s32 %s11, %s18
    %p20 = scmp.eq.s32.totalorder %s19, 0
    %s22 = sadd.s32 %s21, 1
    %s23 = scalar_select %p20, %s21, %s22
    %p26 = pneg %p20
    %p27 = scmp.eq.s32.totalorder %s11, 1
    %p28 = por %p26, %p27
    %p29 = scmp.ne.s32.totalorder %s21, %s24
    %p30 = scmp.eq.s32.totalorder %s11, 0
    %p31 = por %p29, %p30
    %p32 = scmp.ne.s32.totalorder %s21, %s24
    %p33 = scmp.eq.s32.totalorder %s16, 1
    %p34 = por %p32, %p33
    %p35 = scmp.ne.s32.totalorder %s24, %s25
    %p36 = scmp.eq.s32.totalorder %s16, 0
    %p37 = por %p35, %p36
    %p38 = scmp.ne.s32.totalorder %s24, %s25
    %p39 = scmp.eq.s32.totalorder %s17, 1
    %p40 = por %p38, %p39
    %p42 = scmp.ne.s32.totalorder %s25, %s41
    %p43 = scmp.eq.s32.totalorder %s17, 0
    %p44 = por %p42, %p43
    %s46 = sadd.s32 %s45, 1
    %p49 = scmp.eq.s32.totalorder %s11, 1
    %p50 = scmp.ne.s32.totalorder %s45, %s47
    %p51 = scmp.eq.s32.totalorder %s11, 0
    %p52 = por %p50, %p51
    %p53 = scmp.ne.s32.totalorder %s45, %s47
    %p54 = scmp.eq.s32.totalorder %s16, 1
    %p55 = por %p53, %p54
    %p56 = scmp.ne.s32.totalorder %s47, %s48
    %p57 = scmp.eq.s32.totalorder %s16, 0
    %p58 = por %p56, %p57
    %p59 = scmp.ne.s32.totalorder %s47, %s48
    %p60 = scmp.eq.s32.totalorder %s17, 1
    %p61 = por %p59, %p60
    %p63 = scmp.ne.s32.totalorder %s48, %s62
    %p64 = scmp.eq.s32.totalorder %s17, 0
    %p65 = por %p63, %p64
    %s67 = sadd.s32 %s66, 1
    %p70 = scmp.eq.s32.totalorder %s11, 1
    %p71 = scmp.ne.s32.totalorder %s66, %s68
    %p72 = scmp.eq.s32.totalorder %s11, 0
    %p73 = por %p71, %p72
    %p74 = scmp.ne.s32.totalorder %s66, %s68
    %p75 = scmp.eq.s32.totalorder %s16, 1
    %p76 = por %p74, %p75
    %p77 = scmp.ne.s32.totalorder %s68, %s69
    %p78 = scmp.eq.s32.totalorder %s16, 0
    %p79 = por %p77, %p78
    %p80 = scmp.ne.s32.totalorder %s68, %s69
    %p81 = scmp.eq.s32.totalorder %s17, 1
    %p82 = por %p80, %p81
    %p84 = scmp.ne.s32.totalorder %s69, %s83
    %p85 = scmp.eq.s32.totalorder %s17, 0
    %p86 = por %p84, %p85
    %s88 = sadd.s32 %s87, 1
    %p91 = scmp.eq.s32.totalorder %s11, 1
    %p92 = scmp.ne.s32.totalorder %s87, %s89
    %p93 = scmp.eq.s32.totalorder %s11, 0
    %p94 = por %p92, %p93
    %p95 = scmp.ne.s32.totalorder %s87, %s89
    %p96 = scmp.eq.s32.totalorder %s16, 1
    %p97 = por %p95, %p96
    %p98 = scmp.ne.s32.totalorder %s89, %s90
    %p99 = scmp.eq.s32.totalorder %s16, 0
    %p100 = por %p98, %p99
    %p101 = scmp.ne.s32.totalorder %s89, %s90
    %p102 = scmp.eq.s32.totalorder %s17, 1
    %p103 = por %p101, %p102
    %p105 = scmp.ne.s32.totalorder %s90, %s104
    %p106 = scmp.eq.s32.totalorder %s17, 0
    %p107 = por %p105, %p106
    %s109 = sadd.s32 %s108, 1
    %p112 = scmp.eq.s32.totalorder %s11, 1
    %p113 = scmp.ne.s32.totalorder %s108, %s110
    %p114 = scmp.eq.s32.totalorder %s11, 0
    %p115 = por %p113, %p114
    %p116 = scmp.ne.s32.totalorder %s108, %s110
    %p117 = scmp.eq.s32.totalorder %s16, 1
    %p118 = por %p116, %p117
    %p119 = scmp.ne.s32.totalorder %s110, %s111
    %p120 = scmp.eq.s32.totalorder %s16, 0
    %p121 = por %p119, %p120
    %p122 = scmp.ne.s32.totalorder %s110, %s111
    %p123 = scmp.eq.s32.totalorder %s17, 1
    %p124 = por %p122, %p123
    %p126 = scmp.ne.s32.totalorder %s111, %s125
    %p127 = scmp.eq.s32.totalorder %s17, 0
    %p128 = por %p126, %p127
    %s129 = ssub.s32 %s11, %s18
    %p130 = scmp.eq.s32.totalorder %s129, 0
    %s132 = sadd.s32 %s131, 1
    %s133 = scalar_select %p130, %s131, %s132
    %p136 = pneg %p130
    %p137 = scmp.eq.s32.totalorder %s11, 1
    %p138 = por %p136, %p137
    %p139 = scmp.ne.s32.totalorder %s131, %s134
    %p140 = scmp.eq.s32.totalorder %s11, 0
    %p141 = por %p139, %p140
    %p142 = scmp.ne.s32.totalorder %s131, %s134
    %p143 = scmp.eq.s32.totalorder %s16, 1
    %p144 = por %p142, %p143
    %p145 = scmp.ne.s32.totalorder %s134, %s135
    %p146 = scmp.eq.s32.totalorder %s16, 0
    %p147 = por %p145, %p146
    %p148 = scmp.ne.s32.totalorder %s134, %s135
    %p149 = scmp.eq.s32.totalorder %s17, 1
    %p150 = por %p148, %p149
    %p152 = scmp.ne.s32.totalorder %s135, %s151
    %p153 = scmp.eq.s32.totalorder %s17, 0
    %p154 = por %p152, %p153
    %p155 = scmp.le.s32.totalorder 1, %s11
    %p156 = scmp.lt.s32.totalorder %s11, 3
    %p157 = pnand %p155, %p156
    %p158 = pneg %p157
    // Predicated region
    $region9: #{forward_single.1} parent=5 // pred_check
      _
    $region10: #{forward_single.1} parent=5 // pred_check_branch
      %160 = sbr.rel (%p157) target = $region12
    $region11: #{forward_single.1} parent=5 // pred_region
      %s161 = ssub.s32 %s11, 1
      // Predicated region
      $region13: #{forward_single.1} parent=11 // pred_check
        %p162 = pneg %p58
      $region14: #{forward_single.1} parent=11 // pred_check_branch
        %164 = sbr.rel (%p162) target = $region16
      $region15: #{forward_single.1} parent=11 // pred_region
        _
      $region16: #{forward_single.1} parent=11 // pred_fallthru
        _
      // Predicated region
      $region17: #{forward_single.1} parent=11 // pred_check
        %p165 = pneg %p79
      $region18: #{forward_single.1} parent=11 // pred_check_branch
        %167 = sbr.rel (%p165) target = $region20
      $region19: #{forward_single.1} parent=11 // pred_region
        _
      $region20: #{forward_single.1} parent=11 // pred_fallthru
        _
      // Predicated region
      $region21: #{forward_single.1} parent=11 // pred_check
        %p168 = pneg %p100
      $region22: #{forward_single.1} parent=11 // pred_check_branch
        %170 = sbr.rel (%p168) target = $region24
      $region23: #{forward_single.1} parent=11 // pred_region
        _
      $region24: #{forward_single.1} parent=11 // pred_fallthru
        _
      // Predicated region
      $region25: #{forward_single.1} parent=11 // pred_check
        %p171 = pneg %p121
      $region26: #{forward_single.1} parent=11 // pred_check_branch
        %173 = sbr.rel (%p171) target = $region28
      $region27: #{forward_single.1} parent=11 // pred_region
        _
      $region28: #{forward_single.1} parent=11 // pred_fallthru
        _
    $region12: #{forward_single.1} parent=5 // pred_fallthru
      _
    %p174 = scmp.lt.s32.totalorder %s11, 2
    // Predicated region
    $region29: #{forward_single.1} parent=5 // pred_check
      %p175 = pneg %p174
    $region30: #{forward_single.1} parent=5 // pred_check_branch
      %177 = sbr.rel (%p175) target = $region32
    $region31: #{forward_single.1} parent=5 // pred_region
      // Predicated region
      $region33: #{forward_single.1} parent=31 // pred_check
        %p178 = pneg %p31
      $region34: #{forward_single.1} parent=31 // pred_check_branch
        %180 = sbr.rel (%p178) target = $region36
      $region35: #{forward_single.1} parent=31 // pred_region
        %p181 = scmp.lt.s32.totalorder %s11, 1
        %s182 = scalar_select %p181, %s11, 1
        %s183 = smul.addr %s182, 72
        %s184 = smul.addr %s183, 4
        %s185 = scalar_lea.vmem %s0, %s184
      $region36: #{forward_single.1} parent=31 // pred_fallthru
        _
    $region32: #{forward_single.1} parent=5 // pred_fallthru
      _
    %p186 = scmp.le.s32.totalorder 1, %s11
    %p187 = scmp.lt.s32.totalorder %s11, 3
    %p188 = pnand %p186, %p187
    %p189 = pneg %p188
    // Predicated region
    $region37: #{forward_single.1} parent=5 // pred_check
      _
    $region38: #{forward_single.1} parent=5 // pred_check_branch
      %191 = sbr.rel (%p188) target = $region40
    $region39: #{forward_single.1} parent=5 // pred_region
      %s192 = ssub.s32 %s11, 1
      %p193 = scmp.lt.s32.totalorder %s16, 1
      %s194 = scalar_select %p193, %s16, 1
      %s195 = smul.addr %s194, 72
      %s196 = smul.addr %s195, 4
      %s197 = scalar_lea.vmem %s0, %s196
      %p198 = pneg %p37
      %p199 = pneg %p34
      %p200 = pneg %p58
      %p201 = pneg %p55
      %p202 = pneg %p79
      %p203 = pneg %p76
      %p204 = pneg %p100
      %p205 = pneg %p97
      %p206 = pneg %p121
      %p207 = pneg %p118
      %p208 = pneg %p147
      %p209 = pneg %p144
      %p210 = scmp.lt.s32.totalorder %s16, 1
      %s211 = scalar_select %p210, %s16, 1
      %s212 = smul.addr %s211, 10
      %s213 = smul.addr %s212, 8
      %s214 = scalar_lea.vmem %s5, %s213
      %p215 = scmp.lt.s32.totalorder %s16, 1
      %s216 = scalar_select %p215, %s16, 1
      %s217 = smul.addr %s216, 72
      %s218 = smul.addr %s217, 4
      %s219 = scalar_lea.vmem %s0, %s218
      %p220 = scmp.lt.s32.totalorder %s16, 1
      %s221 = scalar_select %p220, %s16, 1
      %s222 = smul.addr %s221, 10
      %s223 = smul.addr %s222, 8
      %s224 = scalar_lea.vmem %s5, %s223
      %v226 = vld [vmem:[%s1] sm:$0xff]
      %v227 = vld [vmem:[%s1 + $0x8] sm:$0xf]
      %v228 = vld [vmem:[%s1 + $0xc] sm:$0xff]
      %v229 = vld [vmem:[%s1 + $0x14] sm:$0xf]
      %v230 = vld [vmem:[%s1 + $0x18] sm:$0xff]
      %v231 = vld [vmem:[%s1 + $0x20] sm:$0xf]
      %v232 = vld [vmem:[%s1 + $0x24] sm:$0xff]
      %v233 = vld [vmem:[%s1 + $0x2c] sm:$0xf]
      %v234 = vld [vmem:[%s1 + $0x30] sm:$0xff]
      %v235 = vld [vmem:[%s1 + $0x38] sm:$0xf]
      %v236 = vld [vmem:[%s1 + $0x3c] sm:$0xff]
      %v237 = vld [vmem:[%s1 + $0x44] sm:$0xf]
      %v238 = vld [vmem:[%s1 + $0x48] sm:$0xff]
      %v239 = vld [vmem:[%s1 + $0x50] sm:$0xf]
      %v240 = vld [vmem:[%s1 + $0x54] sm:$0xff]
      %v241 = vld [vmem:[%s1 + $0x5c] sm:$0xf]
      %v242 = vld [vmem:[%s1 + $0x60] sm:$0xff]
      %v243 = vld [vmem:[%s1 + $0x68] sm:$0xf]
      %v244 = vld [vmem:[%s1 + $0x6c] sm:$0xff]
      %v245 = vld [vmem:[%s1 + $0x74] sm:$0xf]
      %v246 = vld [vmem:[%s1 + $0x78] sm:$0xff]
      %v247 = vld [vmem:[%s1 + $0x80] sm:$0xf]
      %v248 = vld [vmem:[%s1 + $0x84] sm:$0xff]
      %v249 = vld [vmem:[%s1 + $0x8c] sm:$0xf]
      %v250 = vld [vmem:[%s1 + $0x90] sm:$0xff]
      %v251 = vld [vmem:[%s1 + $0x98] sm:$0xf]
      %v252 = vld [vmem:[%s1 + $0x9c] sm:$0xff]
      %v253 = vld [vmem:[%s1 + $0xa4] sm:$0xf]
      %v254 = vld [vmem:[%s1 + $0xa8] sm:$0xff]
      %v255 = vld [vmem:[%s1 + $0xb0] sm:$0xf]
      %v256 = vld [vmem:[%s1 + $0xb4] sm:$0xff]
      %v257 = vld [vmem:[%s1 + $0xbc] sm:$0xf]
      %v258 = vld [vmem:[%s1 + $0xc0] sm:$0xff]
      %v259 = vld [vmem:[%s1 + $0xc8] sm:$0xf]
      %v260 = vld [vmem:[%s1 + $0xcc] sm:$0xff]
      %v261 = vld [vmem:[%s1 + $0xd4] sm:$0xf]
      %v262 = vld [vmem:[%s1 + $0xd8] sm:$0xff]
      %v263 = vld [vmem:[%s1 + $0xe0] sm:$0xf]
      %v264 = vld [vmem:[%s1 + $0xe4] sm:$0xff]
      %v265 = vld [vmem:[%s1 + $0xec] sm:$0xf]
      %v266 = vld [vmem:[%s219] sm:$0xff]
      %v267 = vld [vmem:[%s219 + $0x8] sm:$0xff]
      %v268 = vld [vmem:[%s219 + $0x10] sm:$0xff]
      %v269 = vld [vmem:[%s219 + $0x18] sm:$0xff]
      %v270 = vld [vmem:[%s219 + $0x20] sm:$0xff]
      %v271 = vld [vmem:[%s219 + $0x28] sm:$0xff]
      %v272 = vld [vmem:[%s219 + $0x30] sm:$0xff]
      %v273 = vld [vmem:[%s219 + $0x38] sm:$0xff]
      %v274 = vld [vmem:[%s219 + $0x40] sm:$0xff]
      %v275 = vld [vmem:[%s219 + $0x48] sm:$0xff]
      %v276 = vld [vmem:[%s219 + $0x50] sm:$0xff]
      %v277 = vld [vmem:[%s219 + $0x58] sm:$0xff]
      %v278 = vld [vmem:[%s219 + $0x60] sm:$0xff]
      %v279 = vld [vmem:[%s219 + $0x68] sm:$0xff]
      %v280 = vld [vmem:[%s219 + $0x70] sm:$0xff]
      %v281 = vld [vmem:[%s219 + $0x78] sm:$0xff]
      %v282 = vld [vmem:[%s219 + $0x80] sm:$0xff]
      %v283 = vld [vmem:[%s219 + $0x88] sm:$0xff]
      %v284 = vld [vmem:[%s219 + $0x90] sm:$0xff]
      %v285 = vld [vmem:[%s219 + $0x98] sm:$0xff]
      %v286 = vld [vmem:[%s219 + $0xa0] sm:$0xff]
      %v287 = vld [vmem:[%s219 + $0xa8] sm:$0xff]
      %v288 = vld [vmem:[%s219 + $0xb0] sm:$0xff]
      %v289 = vld [vmem:[%s219 + $0xb8] sm:$0xff]
      %v290 = vld [vmem:[%s219 + $0xc0] sm:$0xff]
      %v291 = vld [vmem:[%s219 + $0xc8] sm:$0xff]
      %v292 = vld [vmem:[%s219 + $0xd0] sm:$0xff]
      %v293 = vld [vmem:[%s219 + $0xd8] sm:$0xff]
      %v294 = vld [vmem:[%s219 + $0xe0] sm:$0xff]
      %v295 = vld [vmem:[%s219 + $0xe8] sm:$0xff]
      %v296 = vld [vmem:[%s219 + $0xf0] sm:$0xff]
      %v297 = vld [vmem:[%s219 + $0xf8] sm:$0xff]
      %v298 = vld [vmem:[%s219 + $0x100] sm:$0xff]
      %v299 = vld [vmem:[%s219 + $0x108] sm:$0xff]
      %v300 = vld [vmem:[%s219 + $0x110] sm:$0xff]
      %v301 = vld [vmem:[%s219 + $0x118] sm:$0xff]
      %v302 = vld [vmem:[%s2] sm:$0xff]
      %v303 = vld [vmem:[%s2 + $0x8] sm:$0xff]
      %v304 = vld [vmem:[%s2 + $0x10] sm:$0xff]
      %v305 = vld [vmem:[%s2 + $0x18] sm:$0xff]
      %v306 = vld [vmem:[%s2 + $0x20] sm:$0xff]
      %v307 = vld [vmem:[%s2 + $0x28] sm:$0xff]
      %v308 = vld [vmem:[%s2 + $0x30] sm:$0xff]
      %v309 = vld [vmem:[%s2 + $0x38] sm:$0xff]
      %v310 = vld [vmem:[%s2 + $0x40] sm:$0xff]
      %v311 = vld [vmem:[%s2 + $0x48] sm:$0xff]
      %v312 = vld [vmem:[%s2 + $0x50] sm:$0xff]
      %v313 = vld [vmem:[%s2 + $0x58] sm:$0xff]
      %v314 = vld [vmem:[%s2 + $0x60] sm:$0xff]
      %v315 = vld [vmem:[%s2 + $0x68] sm:$0xff]
      %v316 = vld [vmem:[%s2 + $0x70] sm:$0xff]
      %v317 = vld [vmem:[%s2 + $0x78] sm:$0xff]
      %v318 = vld [vmem:[%s2 + $0x80] sm:$0xff]
      %v319 = vld [vmem:[%s2 + $0x88] sm:$0xff]
      %v320 = vld [vmem:[%s2 + $0x90] sm:$0xff]
      %v321 = vld [vmem:[%s2 + $0x98] sm:$0xff]
      %323 = vset.pattern.permute.xlu0 0
      %324 = vperm.xlu0 %323, %v302
      %v325 = vpop.permute.xlu0 %324
      %328 = vset.pattern.permute.xlu0 0
      %329 = vperm.xlu0 %328, %v303
      %v330 = vpop.permute.xlu0 %329
      %333 = vset.pattern.permute.xlu0 0
      %334 = vperm.xlu0 %333, %v304
      %v335 = vpop.permute.xlu0 %334
      %338 = vset.pattern.permute.xlu0 0
      %339 = vperm.xlu0 %338, %v305
      %v340 = vpop.permute.xlu0 %339
      %343 = vset.pattern.permute.xlu0 0
      %344 = vperm.xlu0 %343, %v306
      %v345 = vpop.permute.xlu0 %344
      %348 = vset.pattern.permute.xlu0 0
      %349 = vperm.xlu0 %348, %v307
      %v350 = vpop.permute.xlu0 %349
      %353 = vset.pattern.permute.xlu0 0
      %354 = vperm.xlu0 %353, %v308
      %v355 = vpop.permute.xlu0 %354
      %358 = vset.pattern.permute.xlu0 0
      %359 = vperm.xlu0 %358, %v309
      %v360 = vpop.permute.xlu0 %359
      %363 = vset.pattern.permute.xlu0 0
      %364 = vperm.xlu0 %363, %v310
      %v365 = vpop.permute.xlu0 %364
      %368 = vset.pattern.permute.xlu0 0
      %369 = vperm.xlu0 %368, %v311
      %v370 = vpop.permute.xlu0 %369
      %373 = vset.pattern.permute.xlu0 0
      %374 = vperm.xlu0 %373, %v312
      %v375 = vpop.permute.xlu0 %374
      %378 = vset.pattern.permute.xlu0 0
      %379 = vperm.xlu0 %378, %v313
      %v380 = vpop.permute.xlu0 %379
      %383 = vset.pattern.permute.xlu0 0
      %384 = vperm.xlu0 %383, %v314
      %v385 = vpop.permute.xlu0 %384
      %388 = vset.pattern.permute.xlu0 0
      %389 = vperm.xlu0 %388, %v315
      %v390 = vpop.permute.xlu0 %389
      %393 = vset.pattern.permute.xlu0 0
      %394 = vperm.xlu0 %393, %v316
      %v395 = vpop.permute.xlu0 %394
      %398 = vset.pattern.permute.xlu0 0
      %399 = vperm.xlu0 %398, %v317
      %v400 = vpop.permute.xlu0 %399
      %403 = vset.pattern.permute.xlu0 0
      %404 = vperm.xlu0 %403, %v318
      %v405 = vpop.permute.xlu0 %404
      %408 = vset.pattern.permute.xlu0 0
      %409 = vperm.xlu0 %408, %v319
      %v410 = vpop.permute.xlu0 %409
      %413 = vset.pattern.permute.xlu0 0
      %414 = vperm.xlu0 %413, %v320
      %v415 = vpop.permute.xlu0 %414
      %418 = vset.pattern.permute.xlu0 0
      %419 = vperm.xlu0 %418, %v321
      %v420 = vpop.permute.xlu0 %419
      %v462 = vunpack.c.l.b16 %v226
      %v463 = vunpack.c.h.b16 %v226
      %v464 = vunpack.c.l.b16 %v227
      %v465 = vunpack.c.l.b16 %v228
      %v466 = vunpack.c.h.b16 %v228
      %v467 = vunpack.c.l.b16 %v229
      %v468 = vunpack.c.l.b16 %v230
      %v469 = vunpack.c.h.b16 %v230
      %v470 = vunpack.c.l.b16 %v231
      %v471 = vunpack.c.l.b16 %v232
      %v472 = vunpack.c.h.b16 %v232
      %v473 = vunpack.c.l.b16 %v233
      %v474 = vunpack.c.l.b16 %v234
      %v475 = vunpack.c.h.b16 %v234
      %v476 = vunpack.c.l.b16 %v235
      %v477 = vunpack.c.l.b16 %v236
      %v478 = vunpack.c.h.b16 %v236
      %v479 = vunpack.c.l.b16 %v237
      %v480 = vunpack.c.l.b16 %v238
      %v481 = vunpack.c.h.b16 %v238
      %v482 = vunpack.c.l.b16 %v239
      %v483 = vunpack.c.l.b16 %v240
      %v484 = vunpack.c.h.b16 %v240
      %v485 = vunpack.c.l.b16 %v241
      %v486 = vunpack.c.l.b16 %v242
      %v487 = vunpack.c.h.b16 %v242
      %v488 = vunpack.c.l.b16 %v243
      %v489 = vunpack.c.l.b16 %v244
      %v490 = vunpack.c.h.b16 %v244
      %v491 = vunpack.c.l.b16 %v245
      %v492 = vunpack.c.l.b16 %v246
      %v493 = vunpack.c.h.b16 %v246
      %v494 = vunpack.c.l.b16 %v247
      %v495 = vunpack.c.l.b16 %v248
      %v496 = vunpack.c.h.b16 %v248
      %v497 = vunpack.c.l.b16 %v249
      %v498 = vunpack.c.l.b16 %v250
      %v499 = vunpack.c.h.b16 %v250
      %v500 = vunpack.c.l.b16 %v251
      %v501 = vunpack.c.l.b16 %v252
      %v502 = vunpack.c.h.b16 %v252
      %v503 = vunpack.c.l.b16 %v253
      %v504 = vunpack.c.l.b16 %v254
      %v505 = vunpack.c.h.b16 %v254
      %v506 = vunpack.c.l.b16 %v255
      %v507 = vunpack.c.l.b16 %v256
      %v508 = vunpack.c.h.b16 %v256
      %v509 = vunpack.c.l.b16 %v257
      %v510 = vunpack.c.l.b16 %v258
      %v511 = vunpack.c.h.b16 %v258
      %v512 = vunpack.c.l.b16 %v259
      %v513 = vunpack.c.l.b16 %v260
      %v514 = vunpack.c.h.b16 %v260
      %v515 = vunpack.c.l.b16 %v261
      %v516 = vunpack.c.l.b16 %v262
      %v517 = vunpack.c.h.b16 %v262
      %v518 = vunpack.c.l.b16 %v263
      %v519 = vunpack.c.l.b16 %v264
      %v520 = vunpack.c.h.b16 %v264
      %v521 = vunpack.c.l.b16 %v265
      %v522 = vpack.c.b16 %v465, %v462
      %v523 = vpack.c.b16 %v466, %v463
      %v524 = vpack.c.b16 %v467, %v464
      %v525 = vpack.c.b16 %v471, %v468
      %v526 = vpack.c.b16 %v472, %v469
      %v527 = vpack.c.b16 %v473, %v470
      %v528 = vpack.c.b16 %v477, %v474
      %v529 = vpack.c.b16 %v478, %v475
      %v530 = vpack.c.b16 %v479, %v476
      %v531 = vpack.c.b16 %v483, %v480
      %v532 = vpack.c.b16 %v484, %v481
      %v533 = vpack.c.b16 %v485, %v482
      %v534 = vpack.c.b16 %v489, %v486
      %v535 = vpack.c.b16 %v490, %v487
      %v536 = vpack.c.b16 %v491, %v488
      %v537 = vpack.c.b16 %v495, %v492
      %v538 = vpack.c.b16 %v496, %v493
      %v539 = vpack.c.b16 %v497, %v494
      %v540 = vpack.c.b16 %v501, %v498
      %v541 = vpack.c.b16 %v502, %v499
      %v542 = vpack.c.b16 %v503, %v500
      %v543 = vpack.c.b16 %v507, %v504
      %v544 = vpack.c.b16 %v508, %v505
      %v545 = vpack.c.b16 %v509, %v506
      %v546 = vpack.c.b16 %v513, %v510
      %v547 = vpack.c.b16 %v514, %v511
      %v548 = vpack.c.b16 %v515, %v512
      %v549 = vpack.c.b16 %v519, %v516
      %v550 = vpack.c.b16 %v520, %v517
      %v551 = vpack.c.b16 %v521, %v518
      %v608 = vunpack.c.l.b16 %v266
      %v609 = vunpack.c.h.b16 %v266
      %v610 = vunpack.c.l.b16 %v267
      %v611 = vunpack.c.h.b16 %v267
      %v612 = vunpack.c.l.b16 %v268
      %v613 = vunpack.c.h.b16 %v268
      %v614 = vunpack.c.l.b16 %v269
      %v615 = vunpack.c.h.b16 %v269
      %v616 = vunpack.c.l.b16 %v270
      %v617 = vunpack.c.h.b16 %v270
      %v618 = vunpack.c.l.b16 %v271
      %v619 = vunpack.c.h.b16 %v271
      %v620 = vunpack.c.l.b16 %v272
      %v621 = vunpack.c.h.b16 %v272
      %v622 = vunpack.c.l.b16 %v273
      %v623 = vunpack.c.h.b16 %v273
      %v624 = vunpack.c.l.b16 %v274
      %v625 = vunpack.c.h.b16 %v274
      %v626 = vunpack.c.l.b16 %v275
      %v627 = vunpack.c.h.b16 %v275
      %v628 = vunpack.c.l.b16 %v276
      %v629 = vunpack.c.h.b16 %v276
      %v630 = vunpack.c.l.b16 %v277
      %v631 = vunpack.c.h.b16 %v277
      %v632 = vunpack.c.l.b16 %v278
      %v633 = vunpack.c.h.b16 %v278
      %v634 = vunpack.c.l.b16 %v279
      %v635 = vunpack.c.h.b16 %v279
      %v636 = vunpack.c.l.b16 %v280
      %v637 = vunpack.c.h.b16 %v280
      %v638 = vunpack.c.l.b16 %v281
      %v639 = vunpack.c.h.b16 %v281
      %v640 = vunpack.c.l.b16 %v282
      %v641 = vunpack.c.h.b16 %v282
      %v642 = vunpack.c.l.b16 %v283
      %v643 = vunpack.c.h.b16 %v283
      %v644 = vunpack.c.l.b16 %v284
      %v645 = vunpack.c.h.b16 %v284
      %v646 = vunpack.c.l.b16 %v285
      %v647 = vunpack.c.h.b16 %v285
      %v648 = vunpack.c.l.b16 %v286
      %v649 = vunpack.c.h.b16 %v286
      %v650 = vunpack.c.l.b16 %v287
      %v651 = vunpack.c.h.b16 %v287
      %v652 = vunpack.c.l.b16 %v288
      %v653 = vunpack.c.h.b16 %v288
      %v654 = vunpack.c.l.b16 %v289
      %v655 = vunpack.c.h.b16 %v289
      %v656 = vunpack.c.l.b16 %v290
      %v657 = vunpack.c.h.b16 %v290
      %v658 = vunpack.c.l.b16 %v291
      %v659 = vunpack.c.h.b16 %v291
      %v660 = vunpack.c.l.b16 %v292
      %v661 = vunpack.c.h.b16 %v292
      %v662 = vunpack.c.l.b16 %v293
      %v663 = vunpack.c.h.b16 %v293
      %v664 = vunpack.c.l.b16 %v294
      %v665 = vunpack.c.h.b16 %v294
      %v666 = vunpack.c.l.b16 %v295
      %v667 = vunpack.c.h.b16 %v295
      %v668 = vunpack.c.l.b16 %v296
      %v669 = vunpack.c.h.b16 %v296
      %v670 = vunpack.c.l.b16 %v297
      %v671 = vunpack.c.h.b16 %v297
      %v672 = vunpack.c.l.b16 %v298
      %v673 = vunpack.c.h.b16 %v298
      %v674 = vunpack.c.l.b16 %v299
      %v675 = vunpack.c.h.b16 %v299
      %v676 = vunpack.c.l.b16 %v300
      %v677 = vunpack.c.h.b16 %v300
      %v678 = vunpack.c.l.b16 %v301
      %v679 = vunpack.c.h.b16 %v301
      %v680 = vpack.c.b16 %v610, %v608
      %v681 = vpack.c.b16 %v611, %v609
      %v682 = vpack.c.b16 %v614, %v612
      %v683 = vpack.c.b16 %v615, %v613
      %v684 = vpack.c.b16 %v618, %v616
      %v685 = vpack.c.b16 %v619, %v617
      %v686 = vpack.c.b16 %v622, %v620
      %v687 = vpack.c.b16 %v623, %v621
      %v688 = vpack.c.b16 %v626, %v624
      %v689 = vpack.c.b16 %v627, %v625
      %v690 = vpack.c.b16 %v630, %v628
      %v691 = vpack.c.b16 %v631, %v629
      %v692 = vpack.c.b16 %v634, %v632
      %v693 = vpack.c.b16 %v635, %v633
      %v694 = vpack.c.b16 %v638, %v636
      %v695 = vpack.c.b16 %v639, %v637
      %v696 = vpack.c.b16 %v642, %v640
      %v697 = vpack.c.b16 %v643, %v641
      %v698 = vpack.c.b16 %v646, %v644
      %v699 = vpack.c.b16 %v647, %v645
      %v700 = vpack.c.b16 %v650, %v648
      %v701 = vpack.c.b16 %v651, %v649
      %v702 = vpack.c.b16 %v654, %v652
      %v703 = vpack.c.b16 %v655, %v653
      %v704 = vpack.c.b16 %v658, %v656
      %v705 = vpack.c.b16 %v659, %v657
      %v706 = vpack.c.b16 %v662, %v660
      %v707 = vpack.c.b16 %v663, %v661
      %v708 = vpack.c.b16 %v666, %v664
      %v709 = vpack.c.b16 %v667, %v665
      %v710 = vpack.c.b16 %v670, %v668
      %v711 = vpack.c.b16 %v671, %v669
      %v712 = vpack.c.b16 %v674, %v672
      %v713 = vpack.c.b16 %v675, %v673
      %v714 = vpack.c.b16 %v678, %v676
      %v715 = vpack.c.b16 %v679, %v677
      %vm752 = vcmask 261120
      %v754 = vsel %vm752, %v524, 0
      %v757 = vsel %vm752, %v527, 0
      %v760 = vsel %vm752, %v530, 0
      %v763 = vsel %vm752, %v533, 0
      %v766 = vsel %vm752, %v536, 0
      %v769 = vsel %vm752, %v539, 0
      %v772 = vsel %vm752, %v542, 0
      %v775 = vsel %vm752, %v545, 0
      %v778 = vsel %vm752, %v548, 0
      %v781 = vsel %vm752, %v551, 0
      %783 = vmatprep.subr.bf16.mxu0 %v681
      %784 = vmatpush1.bf16.msra.mxu0 %v680
      %785 = vmatprep.subr.bf16.mxu0 %v683
      %786 = vmatpush1.bf16.msra.mxu0 %v682
      %787 = vmatprep.subr.bf16.mxu0 %v685
      %788 = vmatpush1.bf16.msra.mxu0 %v684
      %789 = vmatprep.subr.bf16.mxu0 %v687
      %790 = vmatpush1.bf16.msra.mxu0 %v686
      %791 = vmatprep.subr.bf16.mxu0 %v689
      %792 = vmatpush1.bf16.msra.mxu0 %v688
      %793 = vmatprep.subr.bf16.mxu0 %v691
      %794 = vmatpush1.bf16.msra.mxu0 %v690
      %795 = vmatprep.subr.bf16.mxu0 %v693
      %796 = vmatpush1.bf16.msra.mxu0 %v692
      %797 = vmatprep.subr.bf16.mxu0 %v695
      %798 = vmatpush1.bf16.msra.mxu0 %v694
      %799 = vmatprep.subr.bf16.mxu0 %v697
      %800 = vmatpush1.bf16.msra.mxu0 %v696
      %801 = vmatprep.subr.bf16.mxu0 %v699
      %802 = vmatpush1.bf16.msra.mxu0 %v698
      %803 = vmatprep.subr.bf16.mxu0 %v701
      %804 = vmatpush1.bf16.msra.mxu0 %v700
      %805 = vmatprep.subr.bf16.mxu0 %v703
      %806 = vmatpush1.bf16.msra.mxu0 %v702
      %807 = vmatprep.subr.bf16.mxu0 %v705
      %808 = vmatpush1.bf16.msra.mxu0 %v704
      %809 = vmatprep.subr.bf16.mxu0 %v707
      %810 = vmatpush1.bf16.msra.mxu0 %v706
      %811 = vmatprep.subr.bf16.mxu0 %v709
      %812 = vmatpush1.bf16.msra.mxu0 %v708
      %813 = vmatprep.subr.bf16.mxu0 %v711
      %814 = vmatpush1.bf16.msra.mxu0 %v710
      %815 = vmatprep.mubr.bf16.mxu0 %v523
      %816 = vmatmul.mubr.bf16.gmra.mrb[0].mxu0 %v522
      %v817 = vpop.f32.mrb[0].mxu0
      %v818 = vadd.f32 %v325, %v817
      %v819 = vpop.f32.mrb[0].mxu0
      %v820 = vadd.f32 %v325, %v819
      %v821 = vpop.f32.mrb[0].mxu0
      %v822 = vadd.f32 %v330, %v821
      %v823 = vpop.f32.mrb[0].mxu0
      %v824 = vadd.f32 %v330, %v823
      %825 = vmatprep.mubr.bf16.mxu0 %v526
      %826 = vmatmul.mubr.bf16.gmra.mrb[0].mxu0 %v525
      %v827 = vpop.f32.mrb[0].mxu0
      %v828 = vadd.f32 %v335, %v827
      %v829 = vpop.f32.mrb[0].mxu0
      %v830 = vadd.f32 %v335, %v829
      %v831 = vpop.f32.mrb[0].mxu0
      %v832 = vadd.f32 %v340, %v831
      %v833 = vpop.f32.mrb[0].mxu0
      %v834 = vadd.f32 %v340, %v833
      %835 = vmatprep.mubr.bf16.mxu0 %v529
      %836 = vmatmul.mubr.bf16.gmra.mrb[0].mxu0 %v528
      %v837 = vpop.f32.mrb[0].mxu0
      %v838 = vadd.f32 %v345, %v837
      %v839 = vpop.f32.mrb[0].mxu0
      %v840 = vadd.f32 %v345, %v839
      %v841 = vpop.f32.mrb[0].mxu0
      %v842 = vadd.f32 %v350, %v841
      %v843 = vpop.f32.mrb[0].mxu0
      %v844 = vadd.f32 %v350, %v843
      %845 = vmatprep.mubr.bf16.mxu0 %v532
      %846 = vmatmul.mubr.bf16.gmra.mrb[0].mxu0 %v531
      %v847 = vpop.f32.mrb[0].mxu0
      %v848 = vadd.f32 %v355, %v847
      %v849 = vpop.f32.mrb[0].mxu0
      %v850 = vadd.f32 %v355, %v849
      %v851 = vpop.f32.mrb[0].mxu0
      %v852 = vadd.f32 %v360, %v851
      %v853 = vpop.f32.mrb[0].mxu0
      %v854 = vadd.f32 %v360, %v853
      %855 = vmatprep.mubr.bf16.mxu0 %v535
      %856 = vmatmul.mubr.bf16.gmra.mrb[0].mxu0 %v534
      %v857 = vpop.f32.mrb[0].mxu0
      %v858 = vadd.f32 %v365, %v857
      %v859 = vpop.f32.mrb[0].mxu0
      %v860 = vadd.f32 %v365, %v859
      %v861 = vpop.f32.mrb[0].mxu0
      %v862 = vadd.f32 %v370, %v861
      %v863 = vpop.f32.mrb[0].mxu0
      %v864 = vadd.f32 %v370, %v863
      %865 = vmatprep.mubr.bf16.mxu0 %v538
      %866 = vmatmul.mubr.bf16.gmra.mrb[0].mxu0 %v537
      %v867 = vpop.f32.mrb[0].mxu0
      %v868 = vadd.f32 %v375, %v867
      %v869 = vpop.f32.mrb[0].mxu0
      %v870 = vadd.f32 %v375, %v869
      %v871 = vpop.f32.mrb[0].mxu0
      %v872 = vadd.f32 %v380, %v871
      %v873 = vpop.f32.mrb[0].mxu0
      %v874 = vadd.f32 %v380, %v873
      %875 = vmatprep.mubr.bf16.mxu0 %v541
      %876 = vmatmul.mubr.bf16.gmra.mrb[0].mxu0 %v540
      %v877 = vpop.f32.mrb[0].mxu0
      %v878 = vadd.f32 %v385, %v877
      %v879 = vpop.f32.mrb[0].mxu0
      %v880 = vadd.f32 %v385, %v879
      %v881 = vpop.f32.mrb[0].mxu0
      %v882 = vadd.f32 %v390, %v881
      %v883 = vpop.f32.mrb[0].mxu0
      %v884 = vadd.f32 %v390, %v883
      %885 = vmatprep.mubr.bf16.mxu0 %v544
      %886 = vmatmul.mubr.bf16.gmra.mrb[0].mxu0 %v543
      %v887 = vpop.f32.mrb[0].mxu0
      %v888 = vadd.f32 %v395, %v887
      %v889 = vpop.f32.mrb[0].mxu0
      %v890 = vadd.f32 %v395, %v889
      %v891 = vpop.f32.mrb[0].mxu0
      %v892 = vadd.f32 %v400, %v891
      %v893 = vpop.f32.mrb[0].mxu0
      %v894 = vadd.f32 %v400, %v893
      %895 = vmatprep.mubr.bf16.mxu0 %v547
      %896 = vmatmul.mubr.bf16.gmra.mrb[0].mxu0 %v546
      %v897 = vpop.f32.mrb[0].mxu0
      %v898 = vadd.f32 %v405, %v897
      %v899 = vpop.f32.mrb[0].mxu0
      %v900 = vadd.f32 %v405, %v899
      %v901 = vpop.f32.mrb[0].mxu0
      %v902 = vadd.f32 %v410, %v901
      %v903 = vpop.f32.mrb[0].mxu0
      %v904 = vadd.f32 %v410, %v903
      %905 = vmatprep.mubr.bf16.mxu0 %v550
      %906 = vmatmul.mubr.bf16.gmra.mrb[0].mxu0 %v549
      %v907 = vpop.f32.mrb[0].mxu0
      %v908 = vadd.f32 %v415, %v907
      %v909 = vpop.f32.mrb[0].mxu0
      %v910 = vadd.f32 %v415, %v909
      %v911 = vpop.f32.mrb[0].mxu0
      %v912 = vadd.f32 %v420, %v911
      %v913 = vpop.f32.mrb[0].mxu0
      %v914 = vadd.f32 %v420, %v913
      %915 = vdwg.mxu0
      %916 = vmatprep.subr.bf16.mxu0 %v713
      %917 = vmatpush1.bf16.msra.mxu0 %v712
      %918 = vmatprep.subr.bf16.mxu0 %v715
      %919 = vmatpush1.bf16.msra.mxu0 %v714
      %920 = vmatprep.subr.bf16.mxu0 0
      %921 = vmatpush1.bf16.msra.mxu0 0
      %922 = vmatprep.subr.bf16.mxu0 0
      %923 = vmatpush1.bf16.msra.mxu0 0
      %924 = vmatprep.subr.bf16.mxu0 0
      %925 = vmatpush1.bf16.msra.mxu0 0
      %926 = vmatprep.subr.bf16.mxu0 0
      %927 = vmatpush1.bf16.msra.mxu0 0
      %928 = vmatprep.subr.bf16.mxu0 0
      %929 = vmatpush1.bf16.msra.mxu0 0
      %930 = vmatprep.subr.bf16.mxu0 0
      %931 = vmatpush1.bf16.msra.mxu0 0
      %932 = vmatprep.subr.bf16.mxu0 0
      %933 = vmatpush1.bf16.msra.mxu0 0
      %934 = vmatprep.subr.bf16.mxu0 0
      %935 = vmatpush1.bf16.msra.mxu0 0
      %936 = vmatprep.subr.bf16.mxu0 0
      %937 = vmatpush1.bf16.msra.mxu0 0
      %938 = vmatprep.subr.bf16.mxu0 0
      %939 = vmatpush1.bf16.msra.mxu0 0
      %940 = vmatprep.subr.bf16.mxu0 0
      %941 = vmatpush1.bf16.msra.mxu0 0
      %942 = vmatprep.subr.bf16.mxu0 0
      %943 = vmatpush1.bf16.msra.mxu0 0
      %944 = vmatprep.subr.bf16.mxu0 0
      %945 = vmatpush1.bf16.msra.mxu0 0
      %946 = vmatprep.subr.bf16.mxu0 0
      %947 = vmatpush1.bf16.msra.mxu0 0
      %948 = vmatprep.mubr.bf16.mxu0 0
      %949 = vmatmul.mubr.bf16.gmra.mrb[0].mxu0 %v754
      %v950 = vpop.f32.mrb[0].mxu0
      %v951 = vadd.f32 %v818, %v950
      %v952 = vpop.f32.mrb[0].mxu0
      %v953 = vadd.f32 %v820, %v952
      %v954 = vpop.f32.mrb[0].mxu0
      %v955 = vadd.f32 %v822, %v954
      %v956 = vpop.f32.mrb[0].mxu0
      %v957 = vadd.f32 %v824, %v956
      %958 = vmatprep.mubr.bf16.mxu0 0
      %959 = vmatmul.mubr.bf16.gmra.mrb[0].mxu0 %v757
      %v960 = vpop.f32.mrb[0].mxu0
      %v961 = vadd.f32 %v828, %v960
      %v962 = vpop.f32.mrb[0].mxu0
      %v963 = vadd.f32 %v830, %v962
      %v964 = vpop.f32.mrb[0].mxu0
      %v965 = vadd.f32 %v832, %v964
      %v966 = vpop.f32.mrb[0].mxu0
      %v967 = vadd.f32 %v834, %v966
      %968 = vmatprep.mubr.bf16.mxu0 0
      %969 = vmatmul.mubr.bf16.gmra.mrb[0].mxu0 %v760
      %v970 = vpop.f32.mrb[0].mxu0
      %v971 = vadd.f32 %v838, %v970
      %v972 = vpop.f32.mrb[0].mxu0
      %v973 = vadd.f32 %v840, %v972
      %v974 = vpop.f32.mrb[0].mxu0
      %v975 = vadd.f32 %v842, %v974
      %v976 = vpop.f32.mrb[0].mxu0
      %v977 = vadd.f32 %v844, %v976
      %978 = vmatprep.mubr.bf16.mxu0 0
      %979 = vmatmul.mubr.bf16.gmra.mrb[0].mxu0 %v763
      %v980 = vpop.f32.mrb[0].mxu0
      %v981 = vadd.f32 %v848, %v980
      %v982 = vpop.f32.mrb[0].mxu0
      %v983 = vadd.f32 %v850, %v982
      %v984 = vpop.f32.mrb[0].mxu0
      %v985 = vadd.f32 %v852, %v984
      %v986 = vpop.f32.mrb[0].mxu0
      %v987 = vadd.f32 %v854, %v986
      %988 = vmatprep.mubr.bf16.mxu0 0
      %989 = vmatmul.mubr.bf16.gmra.mrb[0].mxu0 %v766
      %v990 = vpop.f32.mrb[0].mxu0
      %v991 = vadd.f32 %v858, %v990
      %v992 = vpop.f32.mrb[0].mxu0
      %v993 = vadd.f32 %v860, %v992
      %v994 = vpop.f32.mrb[0].mxu0
      %v995 = vadd.f32 %v862, %v994
      %v996 = vpop.f32.mrb[0].mxu0
      %v997 = vadd.f32 %v864, %v996
      %998 = vmatprep.mubr.bf16.mxu0 0
      %999 = vmatmul.mubr.bf16.gmra.mrb[0].mxu0 %v769
      %v1000 = vpop.f32.mrb[0].mxu0
      %v1001 = vadd.f32 %v868, %v1000
      %v1002 = vpop.f32.mrb[0].mxu0
      %v1003 = vadd.f32 %v870, %v1002
      %v1004 = vpop.f32.mrb[0].mxu0
      %v1005 = vadd.f32 %v872, %v1004
      %v1006 = vpop.f32.mrb[0].mxu0
      %v1007 = vadd.f32 %v874, %v1006
      %1008 = vmatprep.mubr.bf16.mxu0 0
      %1009 = vmatmul.mubr.bf16.gmra.mrb[0].mxu0 %v772
      %v1010 = vpop.f32.mrb[0].mxu0
      %v1011 = vadd.f32 %v878, %v1010
      %v1012 = vpop.f32.mrb[0].mxu0
      %v1013 = vadd.f32 %v880, %v1012
      %v1014 = vpop.f32.mrb[0].mxu0
      %v1015 = vadd.f32 %v882, %v1014
      %v1016 = vpop.f32.mrb[0].mxu0
      %v1017 = vadd.f32 %v884, %v1016
      %1018 = vmatprep.mubr.bf16.mxu0 0
      %1019 = vmatmul.mubr.bf16.gmra.mrb[0].mxu0 %v775
      %v1020 = vpop.f32.mrb[0].mxu0
      %v1021 = vadd.f32 %v888, %v1020
      %v1022 = vpop.f32.mrb[0].mxu0
      %v1023 = vadd.f32 %v890, %v1022
      %v1024 = vpop.f32.mrb[0].mxu0
      %v1025 = vadd.f32 %v892, %v1024
      %v1026 = vpop.f32.mrb[0].mxu0
      %v1027 = vadd.f32 %v894, %v1026
      %1028 = vmatprep.mubr.bf16.mxu0 0
      %1029 = vmatmul.mubr.bf16.gmra.mrb[0].mxu0 %v778
      %v1030 = vpop.f32.mrb[0].mxu0
      %v1031 = vadd.f32 %v898, %v1030
      %v1032 = vpop.f32.mrb[0].mxu0
      %v1033 = vadd.f32 %v900, %v1032
      %v1034 = vpop.f32.mrb[0].mxu0
      %v1035 = vadd.f32 %v902, %v1034
      %v1036 = vpop.f32.mrb[0].mxu0
      %v1037 = vadd.f32 %v904, %v1036
      %1038 = vmatprep.mubr.bf16.mxu0 0
      %1039 = vmatmul.mubr.bf16.gmra.mrb[0].mxu0 %v781
      %v1040 = vpop.f32.mrb[0].mxu0
      %v1041 = vadd.f32 %v908, %v1040
      %v1042 = vpop.f32.mrb[0].mxu0
      %v1043 = vadd.f32 %v910, %v1042
      %v1044 = vpop.f32.mrb[0].mxu0
      %v1045 = vadd.f32 %v912, %v1044
      %v1046 = vpop.f32.mrb[0].mxu0
      %v1047 = vadd.f32 %v914, %v1046
      %1048 = vdwg.mxu0
      %v1049 = vmax.f32 %v951, 0.0
      %v1050 = vmax.f32 %v953, 0.0
      %v1051 = vmax.f32 %v955, 0.0
      %v1052 = vmax.f32 %v957, 0.0
      %v1053 = vmax.f32 %v961, 0.0
      %v1054 = vmax.f32 %v963, 0.0
      %v1055 = vmax.f32 %v965, 0.0
      %v1056 = vmax.f32 %v967, 0.0
      %v1057 = vmax.f32 %v971, 0.0
      %v1058 = vmax.f32 %v973, 0.0
      %v1059 = vmax.f32 %v975, 0.0
      %v1060 = vmax.f32 %v977, 0.0
      %v1061 = vmax.f32 %v981, 0.0
      %v1062 = vmax.f32 %v983, 0.0
      %v1063 = vmax.f32 %v985, 0.0
      %v1064 = vmax.f32 %v987, 0.0
      %v1065 = vmax.f32 %v991, 0.0
      %v1066 = vmax.f32 %v993, 0.0
      %v1067 = vmax.f32 %v995, 0.0
      %v1068 = vmax.f32 %v997, 0.0
      %v1069 = vmax.f32 %v1001, 0.0
      %v1070 = vmax.f32 %v1003, 0.0
      %v1071 = vmax.f32 %v1005, 0.0
      %v1072 = vmax.f32 %v1007, 0.0
      %v1073 = vmax.f32 %v1011, 0.0
      %v1074 = vmax.f32 %v1013, 0.0
      %v1075 = vmax.f32 %v1015, 0.0
      %v1076 = vmax.f32 %v1017, 0.0
      %v1077 = vmax.f32 %v1021, 0.0
      %v1078 = vmax.f32 %v1023, 0.0
      %v1079 = vmax.f32 %v1025, 0.0
      %v1080 = vmax.f32 %v1027, 0.0
      %v1081 = vmax.f32 %v1031, 0.0
      %v1082 = vmax.f32 %v1033, 0.0
      %v1083 = vmax.f32 %v1035, 0.0
      %v1084 = vmax.f32 %v1037, 0.0
      %v1085 = vmax.f32 %v1041, 0.0
      %v1086 = vmax.f32 %v1043, 0.0
      %v1087 = vmax.f32 %v1045, 0.0
      %v1088 = vmax.f32 %v1047, 0.0
      %v1089 = vld [vmem:[%s3] sm:$0xff]
      %v1090 = vld [vmem:[%s3 + $0x8] sm:$0xff]
      %v1091 = vld [vmem:[%s3 + $0x10] sm:$0xff]
      %v1092 = vld [vmem:[%s3 + $0x18] sm:$0xff]
      %v1093 = vld [vmem:[%s3 + $0x20] sm:$0x11]
      %v1094 = vpack.c.bf16 %v1051, %v1049
      %v1095 = vpack.c.bf16 %v1052, %v1050
      %v1096 = vpack.c.bf16 %v1055, %v1053
      %v1097 = vpack.c.bf16 %v1056, %v1054
      %v1098 = vpack.c.bf16 %v1059, %v1057
      %v1099 = vpack.c.bf16 %v1060, %v1058
      %v1100 = vpack.c.bf16 %v1063, %v1061
      %v1101 = vpack.c.bf16 %v1064, %v1062
      %v1102 = vpack.c.bf16 %v1067, %v1065
      %v1103 = vpack.c.bf16 %v1068, %v1066
      %v1104 = vpack.c.bf16 %v1071, %v1069
      %v1105 = vpack.c.bf16 %v1072, %v1070
      %v1106 = vpack.c.bf16 %v1075, %v1073
      %v1107 = vpack.c.bf16 %v1076, %v1074
      %v1108 = vpack.c.bf16 %v1079, %v1077
      %v1109 = vpack.c.bf16 %v1080, %v1078
      %v1110 = vpack.c.bf16 %v1083, %v1081
      %v1111 = vpack.c.bf16 %v1084, %v1082
      %v1112 = vpack.c.bf16 %v1087, %v1085
      %v1113 = vpack.c.bf16 %v1088, %v1086
      %v1114 = vld [vmem:[%s4] sm:$0xff]
      %v1115 = vld [vmem:[%s4 + $0x8] sm:$0xff]
      %v1116 = vld [vmem:[%s4 + $0x10] sm:$0xff]
      %v1117 = vld [vmem:[%s4 + $0x18] sm:$0xff]
      %v1118 = vld [vmem:[%s4 + $0x20] sm:$0x3]
      %1120 = vset.pattern.permute.xlu0 0
      %1121 = vperm.xlu0 %1120, %v1114
      %v1122 = vpop.permute.xlu0 %1121
      %1125 = vset.pattern.permute.xlu0 0
      %1126 = vperm.xlu0 %1125, %v1115
      %v1127 = vpop.permute.xlu0 %1126
      %1130 = vset.pattern.permute.xlu0 0
      %1131 = vperm.xlu0 %1130, %v1116
      %v1132 = vpop.permute.xlu0 %1131
      %1135 = vset.pattern.permute.xlu0 0
      %1136 = vperm.xlu0 %1135, %v1117
      %v1137 = vpop.permute.xlu0 %1136
      %1140 = vset.pattern.permute.xlu0 0
      %1141 = vperm.xlu0 %1140, %v1118
      %v1142 = vpop.permute.xlu0 %1141
      %v1149 = vunpack.c.l.b16 %v1089
      %v1150 = vunpack.c.h.b16 %v1089
      %v1151 = vunpack.c.l.b16 %v1090
      %v1152 = vunpack.c.h.b16 %v1090
      %v1153 = vunpack.c.l.b16 %v1091
      %v1154 = vunpack.c.h.b16 %v1091
      %v1155 = vunpack.c.l.b16 %v1092
      %v1156 = vunpack.c.h.b16 %v1092
      %v1157 = vunpack.c.l.b16 %v1093
      %v1158 = vunpack.c.h.b16 %v1093
      %v1159 = vpack.c.b16 %v1151, %v1149
      %v1160 = vpack.c.b16 %v1152, %v1150
      %v1161 = vpack.c.b16 %v1155, %v1153
      %v1162 = vpack.c.b16 %v1156, %v1154
      %v1163 = vpack.c.b16 %v1157, %v1157
      %v1164 = vpack.c.b16 %v1158, %v1158
      %v1169 = vsel %vm752, %v1160, 0
      %v1172 = vsel %vm752, %v1162, 0
      %v1175 = vsel %vm752, %v1164, 0
      %1177 = vmatprep.subr.bf16.mxu0 %v1095
      %1178 = vmatpush1.bf16.msra.mxu0 %v1094
      %1179 = vmatprep.subr.bf16.mxu0 %v1097
      %1180 = vmatpush1.bf16.msra.mxu0 %v1096
      %1181 = vmatprep.subr.bf16.mxu0 %v1099
      %1182 = vmatpush1.bf16.msra.mxu0 %v1098
      %1183 = vmatprep.subr.bf16.mxu0 %v1101
      %1184 = vmatpush1.bf16.msra.mxu0 %v1100
      %1185 = vmatprep.subr.bf16.mxu0 %v1103
      %1186 = vmatpush1.bf16.msra.mxu0 %v1102
      %1187 = vmatprep.subr.bf16.mxu0 %v1105
      %1188 = vmatpush1.bf16.msra.mxu0 %v1104
      %1189 = vmatprep.subr.bf16.mxu0 %v1107
      %1190 = vmatpush1.bf16.msra.mxu0 %v1106
      %1191 = vmatprep.subr.bf16.mxu0 %v1109
      %1192 = vmatpush1.bf16.msra.mxu0 %v1108
      %1193 = vmatprep.subr.bf16.mxu0 %v1111
      %1194 = vmatpush1.bf16.msra.mxu0 %v1110
      %1195 = vmatprep.subr.bf16.mxu0 %v1113
      %1196 = vmatpush1.bf16.msra.mxu0 %v1112
      %1197 = vmatprep.subr.bf16.mxu0 0
      %1198 = vmatpush1.bf16.msra.mxu0 0
      %1199 = vmatprep.subr.bf16.mxu0 0
      %1200 = vmatpush1.bf16.msra.mxu0 0
      %1201 = vmatprep.subr.bf16.mxu0 0
      %1202 = vmatpush1.bf16.msra.mxu0 0
      %1203 = vmatprep.subr.bf16.mxu0 0
      %1204 = vmatpush1.bf16.msra.mxu0 0
      %1205 = vmatprep.subr.bf16.mxu0 0
      %1206 = vmatpush1.bf16.msra.mxu0 0
      %1207 = vmatprep.subr.bf16.mxu0 0
      %1208 = vmatpush1.bf16.msra.mxu0 0
      %1209 = vmatprep.mubr.bf16.mxu0 %v1169
      %1210 = vmatmul.mubr.bf16.gmra.mrb[0].mxu0 %v1159
      %v1211 = vpop.f32.mrb[0].mxu0
      %v1212 = vadd.f32 %v1122, %v1211
      %v1213 = vpop.f32.mrb[0].mxu0
      %v1214 = vadd.f32 %v1122, %v1213
      %v1215 = vpop.f32.mrb[0].mxu0
      %v1216 = vadd.f32 %v1127, %v1215
      %v1217 = vpop.f32.mrb[0].mxu0
      %v1218 = vadd.f32 %v1127, %v1217
      %1219 = vmatprep.mubr.bf16.mxu0 %v1172
      %1220 = vmatmul.mubr.bf16.gmra.mrb[0].mxu0 %v1161
      %v1221 = vpop.f32.mrb[0].mxu0
      %v1222 = vadd.f32 %v1132, %v1221
      %v1223 = vpop.f32.mrb[0].mxu0
      %v1224 = vadd.f32 %v1132, %v1223
      %v1225 = vpop.f32.mrb[0].mxu0
      %v1226 = vadd.f32 %v1137, %v1225
      %v1227 = vpop.f32.mrb[0].mxu0
      %v1228 = vadd.f32 %v1137, %v1227
      %1229 = vmatprep.mubr.bf16.mxu0 %v1175
      %1230 = vmatmul.mubr.bf16.gmra.mrb[0].mxu0 %v1163
      %v1231 = vpop.f32.mrb[0].mxu0
      %v1232 = vadd.f32 %v1142, %v1231
      %v1233 = vpop.f32.mrb[0].mxu0
      %v1234 = vadd.f32 %v1142, %v1233
      %v1235 = vpop.f32.mrb[0].mxu0
      %v1236 = vpop.f32.mrb[0].mxu0
      %1237 = vdwg.mxu0
      %1238 = vst [vmem:[%s224] sm:$0xff] %v1212
      %1239 = vst [vmem:[%s224 + $0x8] sm:$0xff] %v1214
      %1240 = vst [vmem:[%s224 + $0x10] sm:$0xff] %v1216
      %1241 = vst [vmem:[%s224 + $0x18] sm:$0xff] %v1218
      %1242 = vst [vmem:[%s224 + $0x20] sm:$0xff] %v1222
      %1243 = vst [vmem:[%s224 + $0x28] sm:$0xff] %v1224
      %1244 = vst [vmem:[%s224 + $0x30] sm:$0xff] %v1226
      %1245 = vst [vmem:[%s224 + $0x38] sm:$0xff] %v1228
      %1246 = vst [vmem:[%s224 + $0x40] sm:$0x3] %v1232
      %1247 = vst [vmem:[%s224 + $0x48] sm:$0x3] %v1234
      %v1248 = vxor.u32 %v1212, 2147483648
      %v1249 = vxor.u32 %v1214, 2147483648
      %v1250 = vmul.f32 %v1248, 1.442695
      %v1251 = vpow.pop %v1250
      %v1252 = vmul.f32 %v1249, 1.442695
      %v1253 = vpow.pop %v1252
      %v1254 = vadd.f32 %v1251, 1.0
      %v1255 = vadd.f32 %v1253, 1.0
      %v1256 = vrcp.pop %v1254
      %v1257 = vmul.f32 1.0, %v1256
      %v1258 = vrcp.pop %v1255
      %v1259 = vmul.f32 1.0, %v1258
      %v1260 = vmax.f32 %v1257, 0.0001
      %v1261 = vmax.f32 %v1259, 0.0001
      %v1262 = vmin.f32 %v1260, 0.9999
      %v1263 = vmin.f32 %v1261, 0.9999
      %1264 = vst [vmem:[%s224] sm:$0x7] %v1262
      %1265 = vst [vmem:[%s224 + $0x8] sm:$0x7] %v1263
      %v1266 = vxor.u32 %v1216, 2147483648
      %v1267 = vxor.u32 %v1218, 2147483648
      %v1268 = vmul.f32 %v1266, 1.442695
      %v1269 = vpow.pop %v1268
      %v1270 = vmul.f32 %v1267, 1.442695
      %v1271 = vpow.pop %v1270
      %v1272 = vadd.f32 %v1269, 1.0
      %v1273 = vadd.f32 %v1271, 1.0
      %v1274 = vrcp.pop %v1272
      %v1275 = vmul.f32 1.0, %v1274
      %v1276 = vrcp.pop %v1273
      %v1277 = vmul.f32 1.0, %v1276
      %v1278 = vadd.f32 %v1275, 1e-12
      %v1279 = vadd.f32 %v1277, 1e-12
      %v1280 = vrcp.pop %v1278
      %v1281 = vmul.f32 1.0, %v1280
      %v1282 = vrcp.pop %v1279
      %v1283 = vmul.f32 1.0, %v1282
      %v1284 = vsub.f32 %v1281, 1.0
      %v1285 = vsub.f32 %v1283, 1.0
      %v1288 = vcombine.low %v1284, %v1285
      %v1290 = vunpack.c.l.s4 1966171168
      %v1291 = vunpack.c.0.s8 %v1290
      %v1292 = vlaneseq
      %v1293 = vshrl.u32 %v1292, 7
      %v1294 = vsub.s32 %v1291, %v1293
      %v1295 = vrot.slane %v1288, %v1294
      %v1297 = vunpack.c.l.s4 1966171168
      %v1298 = vunpack.c.0.s8 %v1297
      %v1299 = vlaneseq
      %v1300 = vshrl.u32 %v1299, 7
      %v1301 = vsub.s32 %v1298, %v1300
      %v1302 = vrot.slane %v1295, %v1301
      %v1304 = vlaneseq
      %vm1305 = vcmp.ge.s32.totalorder %v1304, 0
      %vm1306 = vcmp.lt.s32.totalorder %v1304, 256
      %vm1307 = vmand %vm1305, %vm1306
      %s1308 = scalar_lea.vmem %s224, 16
      %1309 = vst.msk [vmem:[%s1308] ss:$8 sm:$0x3] %vm1307, %v1302
      %1310 = vst.msk [vmem:[%s1308] ss:$8 sm:$0x0] %vm1307, %v1302
      %p1311 = scmp.lt.s32.totalorder %s16, 1
      %s1312 = scalar_select %p1311, %s16, 1
      %s1313 = smul.addr %s1312, 10
      %s1314 = smul.addr %s1313, 8
      %s1315 = scalar_lea.vmem %s5, %s1314
      // Predicated region
      $region41: #{forward_single.1} parent=39 // pred_check
        %p1316 = pneg %p144
      $region42: #{forward_single.1} parent=39 // pred_check_branch
        %1318 = sbr.rel (%p1316) target = $region44
      $region43: #{forward_single.1} parent=39 // pred_region
        _
      $region44: #{forward_single.1} parent=39 // pred_fallthru
        _
    $region40: #{forward_single.1} parent=5 // pred_fallthru
      _
    %p1319 = scmp.le.s32.totalorder 2, %s11
    // Predicated region
    $region45: #{forward_single.1} parent=5 // pred_check
      %p1320 = pneg %p1319
    $region46: #{forward_single.1} parent=5 // pred_check_branch
      %1322 = sbr.rel (%p1320) target = $region48
    $region47: #{forward_single.1} parent=5 // pred_region
      %s1323 = ssub.s32 %s11, 2
      // Predicated region
      $region49: #{forward_single.1} parent=47 // pred_check
        %p1324 = pneg %p150
      $region50: #{forward_single.1} parent=47 // pred_check_branch
        %1326 = sbr.rel (%p1324) target = $region52
      $region51: #{forward_single.1} parent=47 // pred_region
        %p1327 = scmp.lt.s32.totalorder %s17, 1
        %s1328 = scalar_select %p1327, %s17, 1
        %s1329 = smul.addr %s1328, 10
        %s1330 = smul.addr %s1329, 8
        %s1331 = scalar_lea.vmem %s5, %s1330
      $region52: #{forward_single.1} parent=47 // pred_fallthru
        _
    $region48: #{forward_single.1} parent=5 // pred_fallthru
      _
  $region6: #{forward_single.1} parent=0 // loop_footer
    %s15 = sadd.s32 1, %s11
  $region7: #{forward_single.1} parent=0 // loop_footer_branch
    %10 = sbr.rel target = $region3
  $region8: #{forward_single.1} parent=0 // loop_exit
    _

</llo_original>
